<compile_context>
chip_gen: v6e
topology: v6e:2x2x1
jax: 0.10.0
libtpu: 0.0.40
codegen_flags: <defaults>
</compile_context>

<pallas_src>
import math
import functools

import jax
import jax.numpy as jnp
from jax.experimental import pallas as pl
from jax.experimental.pallas import tpu as pltpu


def _self_attention_kernel(x_ref, w_ref, o_ref, q_scr, acc_scr, *,
                           dk_pad, block_k, compute_dtype):
    # x_ref  : (Bt, S, E)       activations; constant block index across key
    #                           tiles -> stays resident, no re-DMA per tile.
    # w_ref  : (E, 3*dk_pad)    fused [Wq/sqrt(Dk) | Wk | Wv], lane-padded,
    #                           resident across the whole grid.
    # o_ref  : (Bt, S, dk_pad)  lane-dense (padded) output block.
    # q_scr  : (Bt, S, dk_pad)  q projection, computed once per batch block.
    # acc_scr: (Bt, S, dk_pad)  f32 output accumulator over key tiles.
    kt = pl.program_id(1)
    bt, seq, emb = x_ref.shape
    cdt = jnp.float32 if compute_dtype is None else compute_dtype

    @pl.when(kt == 0)
    def _init():
        # One fat (Bt*S, E) @ (E, dk_pad) matmul for q; the 1/sqrt(Dk) scale
        # is already folded into the weight columns in the wrapper.
        x2d = x_ref[...].reshape(bt * seq, emb).astype(cdt)
        q = jnp.dot(x2d, w_ref[:, :dk_pad],
                    preferred_element_type=jnp.float32)
        q_scr[...] = q.reshape(bt, seq, dk_pad).astype(q_scr.dtype)
        acc_scr[...] = jnp.zeros_like(acc_scr)

    # Rows of x belonging to this key tile (sub-range of the resident block).
    if block_k == seq:
        xk = x_ref[...]
    else:
        start = pl.multiple_of(kt * block_k, block_k)
        xk = x_ref[:, pl.ds(start, block_k), :]

    # Fused k & v projection for this key tile: one N=2*dk_pad matmul.
    xk2d = xk.reshape(bt * block_k, emb).astype(cdt)
    kv = jnp.dot(xk2d, w_ref[:, dk_pad:],
                 preferred_element_type=jnp.float32)
    kv = kv.reshape(bt, block_k, 2 * dk_pad)
    k_t = kv[:, :, :dk_pad]
    v_t = kv[:, :, dk_pad:]

    # scores[b, i, j] = (q_i . k_j) / sqrt(Dk)  (scale folded into Wq).
    scores = jnp.einsum("bqd,bkd->bqk",
                        q_scr[...].astype(cdt), k_t.astype(cdt),
                        preferred_element_type=jnp.float32)

    # torch F.softmax(..., dim=1): normalize over the QUERY axis.  All S query
    # rows are present in this block, so each key column's softmax is complete
    # within this tile; no cross-tile renormalization is needed.
    m = jnp.max(scores, axis=1, keepdims=True)
    e_s = jnp.exp(scores - m)
    denom = jnp.sum(e_s, axis=1, keepdims=True)
    attn = e_s / denom

    # Accumulate this key tile's contribution: out += attn_tile @ v_tile.
    acc_scr[...] += jnp.einsum("bqk,bkd->bqd",
                               attn.astype(cdt), v_t.astype(cdt),
                               preferred_element_type=jnp.float32)

    @pl.when(kt == pl.num_programs(1) - 1)
    def _finalize():
        o_ref[...] = acc_scr[...].astype(o_ref.dtype)


def self_attention(x, w, key_dim, *, block_b=None, block_k=None,
                   compute_dtype=None):
    """x: (B, S, E) f32, w: (E, 3*key_dim).  Returns (B, S, key_dim) f32.

    compute_dtype=jnp.bfloat16 runs the matmuls with bf16 inputs and f32
    accumulation; recommended on v5e/v6e/v7x (the MXU peak is bf16 on all
    three generations).  Softmax math always stays in f32.
    """
    B, S, E = x.shape
    assert w.shape == (E, 3 * key_dim)

    # Lane-dense head dim: pad Dk up to a multiple of 128.
    dk_pad = ((key_dim + 127) // 128) * 128
    pad = dk_pad - key_dim

    # Fold 1/sqrt(Dk) into Wq; pad each projection; fuse into one buffer.
    inv_sqrt_dk = 1.0 / math.sqrt(key_dim)
    wq = w[:, :key_dim] * inv_sqrt_dk
    wk = w[:, key_dim:2 * key_dim]
    wv = w[:, 2 * key_dim:]
    if pad:
        zpad = ((0, 0), (0, pad))
        wq = jnp.pad(wq, zpad)
        wk = jnp.pad(wk, zpad)
        wv = jnp.pad(wv, zpad)
    w_fused = jnp.concatenate([wq, wk, wv], axis=1)        # (E, 3*dk_pad)
    if compute_dtype is not None:
        # Cast once here (resident weights) instead of every grid step.
        w_fused = w_fused.astype(compute_dtype)

    # ---- key-tile size: keep per-step scores at O(S * block_k) ----
    if block_k is None:
        if S <= 512:
            block_k = S
        else:
            cands = [d for d in range(512, 7, -8) if S % d == 0]
            block_k = cands[0] if cands else S
    assert S % block_k == 0
    n_kt = S // block_k

    cdt = jnp.float32 if compute_dtype is None else compute_dtype
    cdt_bytes = jnp.dtype(cdt).itemsize

    def step_bytes(bb):
        x_blk = bb * S * E * 4
        out_blk = bb * S * dk_pad * 4
        q_b = bb * S * dk_pad * cdt_bytes
        acc = bb * S * dk_pad * 4
        kv = bb * block_k * 2 * dk_pad * 4
        sc = 3 * bb * S * block_k * 4          # scores / exp / attn live set
        w_b = w_fused.size * w_fused.dtype.itemsize
        return 2 * x_blk + 2 * out_blk + q_b + acc + kv + sc + w_b

    # ---- batch block: fill the MXU and amortize per-step overhead ----
    if block_b is None:
        divisors = [d for d in range(1, B + 1) if B % d == 0]
        # >= 512 fused projection rows per step (2x the 256-row MXU on
        # v6e/v7x, 4x v5e's 128-row MXU).
        good = [d for d in divisors if d * S >= 512]
        block_b = min(good) if good else B
        # v7x has 2 TensorCores: prefer an even number of batch grid steps
        # whenever each step still feeds the MXU >= 256 fused rows.
        if (B // block_b) % 2 == 1:
            alt = [d for d in divisors
                   if d < block_b and (B // d) % 2 == 0 and d * S >= 256]
            if alt:
                block_b = max(alt)
        # Clamp by a VMEM budget (leaves pipelining headroom on v7x 64 MiB/TC).
        budget = 24 * 1024 * 1024
        while step_bytes(block_b) > budget:
            smaller = [d for d in divisors if d < block_b]
            if not smaller:
                break
            block_b = max(smaller)
    assert B % block_b == 0
    n_b = B // block_b

    # VMEM limit from the actual footprint (+50% headroom), capped so the same
    # config also fits v7x's 64 MiB/TC.  On v5e/v6e (128 MiB) the cap could be
    # raised for very large blocks.
    vmem_limit = int(step_bytes(block_b) * 1.5)
    vmem_limit = max(32 * 1024 * 1024, min(vmem_limit, 56 * 1024 * 1024))

    kernel = functools.partial(_self_attention_kernel, dk_pad=dk_pad,
                               block_k=block_k, compute_dtype=compute_dtype)

    out_padded = pl.pallas_call(
        kernel,
        out_shape=jax.ShapeDtypeStruct((B, S, dk_pad), jnp.float32),
        grid_spec=pltpu.PrefetchScalarGridSpec(
            num_scalar_prefetch=0,
            grid=(n_b, n_kt),
            in_specs=[
                # Same block index across key tiles -> x block stays resident.
                pl.BlockSpec((block_b, S, E), lambda b, kt: (b, 0, 0)),
                # Constant block index -> fused weights resident across grid.
                pl.BlockSpec((E, 3 * dk_pad), lambda b, kt: (0, 0)),
            ],
            out_specs=pl.BlockSpec((block_b, S, dk_pad),
                                   lambda b, kt: (b, 0, 0)),
            scratch_shapes=[
                pltpu.VMEM((block_b, S, dk_pad), cdt),          # q
                pltpu.VMEM((block_b, S, dk_pad), jnp.float32),  # out accum
            ],
        ),
        compiler_params=pltpu.CompilerParams(
            dimension_semantics=("parallel", "arbitrary"),
            vmem_limit_bytes=vmem_limit,
        ),
    )(x, w_fused)

    # Drop the zero pad columns (cheap XLA slice outside the kernel).
    # TODO(synk): for tiny key_dim on v5e, a bf16 output (halved writeback)
    # may beat the lane-dense f32 padded store; profile-gated.
    return out_padded[..., :key_dim]


def self_attention_ref(x, w, key_dim):
    # Pure-JAX reference mirroring the PyTorch forward exactly.
    qkv = jnp.matmul(x, w)
    q = qkv[:, :, :key_dim]
    k = qkv[:, :, key_dim:2 * key_dim]
    v = qkv[:, :, 2 * key_dim:]
    scores = jnp.matmul(q, jnp.swapaxes(k, -2, -1)) / math.sqrt(key_dim)
    attn = jax.nn.softmax(scores, axis=1)   # dim=1, as in the torch module
    return jnp.matmul(attn, v)


if __name__ == "__main__":
    # Small shapes consistent with the module: batch=2, seq=8,
    # embedding_dim=32, key_dim=16.
    B, S, E, DK = 2, 8, 32, 16

    key = jax.random.PRNGKey(0)
    kx, kw = jax.random.split(key)
    # Well-conditioned test data: scale W by 1/sqrt(E) so qkv entries are O(1)
    # and the softmax is not pathologically peaky (a peaky softmax amplifies
    # tiny matmul-precision differences into O(1) output differences), and
    # round operands to bf16-representable values so the first matmul is
    # insensitive to whether a backend runs f32 dots as bf16 MXU passes.
    x = jax.random.normal(kx, (B, S, E), dtype=jnp.float32)
    W = jax.random.normal(kw, (E, 3 * DK), dtype=jnp.float32) / math.sqrt(E)
    x = x.astype(jnp.bfloat16).astype(jnp.float32)
    W = W.astype(jnp.bfloat16).astype(jnp.float32)

    out = jax.block_until_ready(self_attention(x, W, DK))
    ref = self_attention_ref(x, W, DK)
    assert out.shape == (B, S, DK)
    # Tolerance covers backend-dependent f32 matmul precision (the XLA
    # reference and the in-kernel MXU path may use different bf16-pass
    # decompositions for f32 dots); genuine semantic errors would be O(1).
    err = float(jnp.max(jnp.abs(out - ref)))
    assert jnp.allclose(out, ref, atol=3e-2, rtol=3e-2), (
        f"mismatch vs reference: max|err|={err}")

    # bf16-matmul path (f32 accumulation): shape / finiteness sanity check.
    out_bf16 = jax.block_until_ready(
        self_attention(x, W, DK, compute_dtype=jnp.bfloat16))
    assert out_bf16.shape == (B, S, DK)
    assert bool(jnp.all(jnp.isfinite(out_bf16)))

    print("KERNEL_OK")
</pallas_src>

<mosaic_0001>
module attributes {stable_mosaic.version = 11 : i64} {
  func.func @_self_attention_kernel(%arg0: i32, %arg1: i32, %arg2: memref<2x8x32xf32, #tpu.memory_space<vmem>>, %arg3: memref<32x384xf32, #tpu.memory_space<vmem>>, %arg4: memref<2x8x128xf32, #tpu.memory_space<vmem>>, %arg5: memref<2x8x128xf32, #tpu.memory_space<vmem>>, %arg6: memref<2x8x128xf32, #tpu.memory_space<vmem>>) attributes {dimension_semantics = [#tpu.dimension_semantics<parallel>, #tpu.dimension_semantics<arbitrary>], iteration_bounds = array<i64: 1, 1>, scalar_prefetch = 0 : i64, scratch_operands = 2 : i64, tpu.core_type = #tpu.core_type<tc>, window_params = [{transform_indices = @transform_0, window_bounds = array<i64: 2, 8, 32>}, {pipeline_mode = #tpu.pipeline_mode<synchronous>, transform_indices = @transform_1, window_bounds = array<i64: 32, 384>}, {transform_indices = @transform_2, window_bounds = array<i64: 2, 8, 128>}]} {
    %c0_i32 = arith.constant 0 : i32
    %0 = arith.cmpi eq, %arg1, %c0_i32 : i32
    %1 = arith.extui %0 : i1 to i32
    %c0_i32_0 = arith.constant 0 : i32
    %2 = arith.cmpi ne, %1, %c0_i32_0 : i32
    scf.if %2 {
      %c0_19 = arith.constant 0 : index
      %c0_20 = arith.constant 0 : index
      %c0_21 = arith.constant 0 : index
      %28 = vector.load %arg2[%c0_19, %c0_20, %c0_21] : memref<2x8x32xf32, #tpu.memory_space<vmem>>, vector<2x8x32xf32>
      %29 = vector.shape_cast %28 : vector<2x8x32xf32> to vector<16x32xf32>
      %c0_22 = arith.constant 0 : index
      %c0_23 = arith.constant 0 : index
      %30 = vector.load %arg3[%c0_22, %c0_23] : memref<32x384xf32, #tpu.memory_space<vmem>>, vector<32x128xf32>
      %cst_24 = arith.constant dense<0.000000e+00> : vector<16x128xf32>
      %31 = tpu.matmul %29, %30, %cst_24 {dimension_numbers = #tpu.dot_dimension_numbers<[1], [0], [0], [1], [0, 0, 1, 1], [], []>} : vector<16x32xf32>, vector<32x128xf32>, vector<16x128xf32> -> vector<16x128xf32>
      %32 = vector.shape_cast %31 : vector<16x128xf32> to vector<2x8x128xf32>
      %c0_25 = arith.constant 0 : index
      %c0_26 = arith.constant 0 : index
      %c0_27 = arith.constant 0 : index
      %33 = vector.load %arg5[%c0_25, %c0_26, %c0_27] : memref<2x8x128xf32, #tpu.memory_space<vmem>>, vector<2x8x128xf32>
      tpu.vector_store %arg5[%c0_25, %c0_26, %c0_27], %32 {strides = array<i32>} : memref<2x8x128xf32, #tpu.memory_space<vmem>>, vector<2x8x128xf32>,
      %cst_28 = arith.constant 0.000000e+00 : f32
      %34 = vector.broadcast %cst_28 : f32 to vector<2x8x128xf32>
      %c0_29 = arith.constant 0 : index
      %c0_30 = arith.constant 0 : index
      %c0_31 = arith.constant 0 : index
      %35 = vector.load %arg6[%c0_29, %c0_30, %c0_31] : memref<2x8x128xf32, #tpu.memory_space<vmem>>, vector<2x8x128xf32>
      tpu.vector_store %arg6[%c0_29, %c0_30, %c0_31], %34 {strides = array<i32>} : memref<2x8x128xf32, #tpu.memory_space<vmem>>, vector<2x8x128xf32>,
    } else {
    }
    %c0 = arith.constant 0 : index
    %c0_1 = arith.constant 0 : index
    %c0_2 = arith.constant 0 : index
    %3 = vector.load %arg2[%c0, %c0_1, %c0_2] : memref<2x8x32xf32, #tpu.memory_space<vmem>>, vector<2x8x32xf32>
    %4 = vector.shape_cast %3 : vector<2x8x32xf32> to vector<16x32xf32>
    %c0_3 = arith.constant 0 : index
    %c128 = arith.constant 128 : index
    %5 = vector.load %arg3[%c0_3, %c128] : memref<32x384xf32, #tpu.memory_space<vmem>>, vector<32x256xf32>
    %cst = arith.constant dense<0.000000e+00> : vector<16x256xf32>
    %6 = tpu.matmul %4, %5, %cst {dimension_numbers = #tpu.dot_dimension_numbers<[1], [0], [0], [1], [0, 0, 1, 1], [], []>} : vector<16x32xf32>, vector<32x256xf32>, vector<16x256xf32> -> vector<16x256xf32>
    %7 = vector.shape_cast %6 : vector<16x256xf32> to vector<2x8x256xf32>
    %8 = vector.extract_strided_slice %7 {offsets = [0, 0, 0], sizes = [2, 8, 128], strides = [1, 1, 1]} : vector<2x8x256xf32> to vector<2x8x128xf32>
    %9 = vector.extract_strided_slice %7 {offsets = [0, 0, 128], sizes = [2, 8, 128], strides = [1, 1, 1]} : vector<2x8x256xf32> to vector<2x8x128xf32>
    %c0_4 = arith.constant 0 : index
    %c0_5 = arith.constant 0 : index
    %c0_6 = arith.constant 0 : index
    %10 = vector.load %arg5[%c0_4, %c0_5, %c0_6] : memref<2x8x128xf32, #tpu.memory_space<vmem>>, vector<2x8x128xf32>
    "tpu.trace_start"() <{level = 10 : i32, message = "bqd,bkd->bqk"}> : () -> ()
    %cst_7 = arith.constant dense<0.000000e+00> : vector<2x8x8xf32>
    %11 = tpu.matmul %10, %8, %cst_7 {dimension_numbers = #tpu.dot_dimension_numbers<[2], [2], [1], [1], [0, 0, 0, 1, 1, 1], [0], [0]>} : vector<2x8x128xf32>, vector<2x8x128xf32>, vector<2x8x8xf32> -> vector<2x8x8xf32>
    "tpu.trace_stop"() : () -> ()
    %cst_8 = arith.constant dense<0xFF800000> : vector<2x8xf32>
    %12 = vector.multi_reduction <maximumf>, %11, %cst_8 [1] : vector<2x8x8xf32> to vector<2x8xf32>
    %13 = vector.shape_cast %12 : vector<2x8xf32> to vector<2x1x8xf32>
    %14 = vector.broadcast %13 : vector<2x1x8xf32> to vector<2x8x8xf32>
    %15 = arith.subf %11, %14 : vector<2x8x8xf32>
    %16 = math.exp %15 : vector<2x8x8xf32>
    %cst_9 = arith.constant dense<0.000000e+00> : vector<2x8xf32>
    %17 = vector.multi_reduction <add>, %16, %cst_9 [1] : vector<2x8x8xf32> to vector<2x8xf32>
    %18 = vector.shape_cast %17 : vector<2x8xf32> to vector<2x1x8xf32>
    %19 = vector.broadcast %18 : vector<2x1x8xf32> to vector<2x8x8xf32>
    %20 = arith.divf %16, %19 : vector<2x8x8xf32>
    %c0_10 = arith.constant 0 : index
    %c0_11 = arith.constant 0 : index
    %c0_12 = arith.constant 0 : index
    %21 = vector.load %arg6[%c0_10, %c0_11, %c0_12] : memref<2x8x128xf32, #tpu.memory_space<vmem>>, vector<2x8x128xf32>
    "tpu.trace_start"() <{level = 10 : i32, message = "bqk,bkd->bqd"}> : () -> ()
    %cst_13 = arith.constant dense<0.000000e+00> : vector<2x8x128xf32>
    %22 = tpu.matmul %20, %9, %cst_13 {dimension_numbers = #tpu.dot_dimension_numbers<[2], [1], [1], [2], [0, 0, 0, 1, 1, 2], [0], [0]>} : vector<2x8x8xf32>, vector<2x8x128xf32>, vector<2x8x128xf32> -> vector<2x8x128xf32>
    "tpu.trace_stop"() : () -> ()
    %23 = arith.addf %21, %22 : vector<2x8x128xf32>
    %c0_14 = arith.constant 0 : index
    %c0_15 = arith.constant 0 : index
    %c0_16 = arith.constant 0 : index
    %24 = vector.load %arg6[%c0_14, %c0_15, %c0_16] : memref<2x8x128xf32, #tpu.memory_space<vmem>>, vector<2x8x128xf32>
    tpu.vector_store %arg6[%c0_14, %c0_15, %c0_16], %23 {strides = array<i32>} : memref<2x8x128xf32, #tpu.memory_space<vmem>>, vector<2x8x128xf32>,
    %c0_i32_17 = arith.constant 0 : i32
    %25 = arith.cmpi eq, %arg1, %c0_i32_17 : i32
    %26 = arith.extui %25 : i1 to i32
    %c0_i32_18 = arith.constant 0 : i32
    %27 = arith.cmpi ne, %26, %c0_i32_18 : i32
    scf.if %27 {
      %c0_19 = arith.constant 0 : index
      %c0_20 = arith.constant 0 : index
      %c0_21 = arith.constant 0 : index
      %28 = vector.load %arg6[%c0_19, %c0_20, %c0_21] : memref<2x8x128xf32, #tpu.memory_space<vmem>>, vector<2x8x128xf32>
      %c0_22 = arith.constant 0 : index
      %c0_23 = arith.constant 0 : index
      %c0_24 = arith.constant 0 : index
      %29 = vector.load %arg4[%c0_22, %c0_23, %c0_24] : memref<2x8x128xf32, #tpu.memory_space<vmem>>, vector<2x8x128xf32>
      tpu.vector_store %arg4[%c0_22, %c0_23, %c0_24], %28 {strides = array<i32>} : memref<2x8x128xf32, #tpu.memory_space<vmem>>, vector<2x8x128xf32>,
    } else {
    }
    return
  }
  func.func @transform_0(%arg0: i32, %arg1: i32) -> (i32, i32, i32) {
    %c0_i32 = arith.constant 0 : i32
    %c0_i32_0 = arith.constant 0 : i32
    %c0_i32_1 = arith.constant 0 : i32
    return %arg0, %c0_i32, %c0_i32_0 : i32, i32, i32
  }
  func.func @transform_1(%arg0: i32, %arg1: i32) -> (i32, i32) {
    %c0_i32 = arith.constant 0 : i32
    %c0_i32_0 = arith.constant 0 : i32
    %c0_i32_1 = arith.constant 0 : i32
    return %c0_i32, %c0_i32_0 : i32, i32
  }
  func.func @transform_2(%arg0: i32, %arg1: i32) -> (i32, i32, i32) {
    %c0_i32 = arith.constant 0 : i32
    %c0_i32_0 = arith.constant 0 : i32
    %c0_i32_1 = arith.constant 0 : i32
    return %arg0, %c0_i32, %c0_i32_0 : i32, i32, i32
  }
}

</mosaic_0001>

<llo_original>
// kernel: tpu_custom_call.1
$region0: #{tpu_custom_call.1}
  #allocation0 [shape = 'u32[]', space=smem, size = 0x4, offset = 0x4, fixed_abs, tag = 'smem constant byte address 0x4 - core index']
  #allocation1 [shape = 'u32[144,128]{1,0:T(1,128)}', space=vmem, size = 0x12000, scoped, tag = 'internal scratch']
  #allocation2 [shape = 'f32[2,8,128]{2,1,0:T(8,128)}', space=vmem, size = 0x2000, scoped, tag = 'scratch operand']
  #allocation3 [shape = 'f32[2,8,128]{2,1,0:T(8,128)}', space=vmem, size = 0x2000, scoped, tag = 'scratch operand']
  %s0 = inlined_call_operand.hbm [shape: f32[2,8,32], index: 0, kind: input, shape index: {}]
  %s1 = inlined_call_operand.hbm [shape: f32[32,384], index: 1, kind: input, shape index: {}]
  %s2 = inlined_call_operand.hbm [shape: f32[2,8,128], index: 2, kind: output, shape index: {}]
  %s3 = sld [smem:[#allocation0]]
  $region34: #{tpu_custom_call.1} parent=0
    _
  %s5 = ssub.s32 1, %s3
  %s6 = scalar_select 0, %s5, %s3
  $region1: #{tpu_custom_call.1} parent=0
    #allocation4 [shape = 'u8[8192]{0}', space=vmem, size = 0x2000, scoped, tag = 'input window, operand 0, single buffered']
    #allocation5 [shape = 's32[1]{0}', space=sflag, size = 0x4, scoped, tag = 'scoped memory for tpu_custom_call.1']
    #allocation6 [shape = 's32[1]{0}', space=sflag, size = 0x4, scoped, tag = 'scoped memory for tpu_custom_call.1']
    #allocation7 [shape = 'u8[49152]{0}', space=vmem, size = 0xc000, scoped, tag = 'input window, operand 1, single buffered']
    #allocation8 [shape = 's32[1]{0}', space=sflag, size = 0x4, scoped, tag = 'scoped memory for tpu_custom_call.1']
    #allocation9 [shape = 'u8[8192]{0}', space=vmem, size = 0x2000, scoped, tag = 'output window, operand 0, single buffered']
    %7 = vsyncpa [#allocation5], 0
    %8 = vsyncpa [#allocation8], 0
    %9 = vsyncpa [#allocation6], 0
    // Predicated region
    $region2: #{tpu_custom_call.1} parent=1 // pred_check
      _
    $region3: #{tpu_custom_call.1} parent=1 // pred_check_branch
      %11 = sbr.rel (0) target = $region5
    $region4: #{tpu_custom_call.1} parent=1 // pred_region
      %s13 = ssub.s32 256, 256
      %14 = vsyncadd [#allocation5], %s13
      %s15 = sshll.u32 [#allocation4], 4
      %s16 = int_to_ptr.vmem [resolvable:$true] %s15
      %21 = dma.hbm_to_vmem [thread:$0]  %s0, 256, %s16, [#allocation5], 128, 128, 8
    $region5: #{tpu_custom_call.1} parent=1 // pred_fallthru
      _
    // Predicated region
    $region6: #{tpu_custom_call.1} parent=1 // pred_check
      _
    $region7: #{tpu_custom_call.1} parent=1 // pred_check_branch
      %23 = sbr.rel (0) target = $region9
    $region8: #{tpu_custom_call.1} parent=1 // pred_region
      %s25 = ssub.s32 1536, 1536
      %26 = vsyncadd [#allocation8], %s25
      %s27 = sshll.u32 [#allocation7], 4
      %s28 = int_to_ptr.vmem [resolvable:$true] %s27
      %33 = dma.hbm_to_vmem [thread:$0]  %s1, 1536, %s28, [#allocation8], 384, 384, 24
    $region9: #{tpu_custom_call.1} parent=1 // pred_fallthru
      _
    // Predicated region
    $region10: #{tpu_custom_call.1} parent=1 // pred_check
      _
    $region11: #{tpu_custom_call.1} parent=1 // pred_check_branch
      %35 = sbr.rel (0) target = $region13
    $region12: #{tpu_custom_call.1} parent=1 // pred_region
      %36 = dma.done [#allocation5], 256
    $region13: #{tpu_custom_call.1} parent=1 // pred_fallthru
      _
    // Predicated region
    $region14: #{tpu_custom_call.1} parent=1 // pred_check
      _
    $region15: #{tpu_custom_call.1} parent=1 // pred_check_branch
      %38 = sbr.rel (0) target = $region17
    $region16: #{tpu_custom_call.1} parent=1 // pred_region
      %39 = dma.done [#allocation8], 1536
    $region17: #{tpu_custom_call.1} parent=1 // pred_fallthru
      _
    %p40 = scmp.eq.s32.totalorder 0, 0
    // Predicated region
    $region18: #{tpu_custom_call.1} parent=1 // pred_check
      %p41 = pneg %p40
    $region19: #{tpu_custom_call.1} parent=1 // pred_check_branch
      %43 = sbr.rel (%p41) target = $region21
    $region20: #{tpu_custom_call.1} parent=1 // pred_region
      %v44 = vld [vmem:[#allocation4] sm:$0xff]
      %v45 = vld [vmem:[#allocation4 + $0x8] sm:$0xff]
      %v46 = vld [vmem:[#allocation7] sm:$0xff]
      %v47 = vld [vmem:[#allocation7 + $0x18] sm:$0xff]
      %v48 = vld [vmem:[#allocation7 + $0x30] sm:$0xff]
      %v49 = vld [vmem:[#allocation7 + $0x48] sm:$0xff]
      %vm50 = vcmask 261120
      %v52 = vsel %vm50, %v44, 0
      %v55 = vsel %vm50, %v45, 0
      %57 = vmatprep.subr.mxu0 0.0
      %58 = vmatpush1.msra.mxu0 0.0
      %59 = vmatprep.subr.mxu0 0.0
      %60 = vmatpush1.msra.mxu0 0.0
      %61 = vmatprep.subr.mxu0 0.0
      %62 = vmatpush1.msra.mxu0 0.0
      %63 = vmatprep.subr.mxu0 0.0
      %64 = vmatpush1.msra.mxu0 0.0
      %65 = vmatprep.subr.mxu0 0.0
      %66 = vmatpush1.msra.mxu0 0.0
      %67 = vmatprep.subr.mxu0 0.0
      %68 = vmatpush1.msra.mxu0 0.0
      %69 = vmatprep.subr.mxu0 0.0
      %70 = vmatpush1.msra.mxu0 0.0
      %71 = vmatprep.subr.mxu0 0.0
      %72 = vmatpush1.msra.mxu0 0.0
      %73 = vmatprep.subr.mxu0 0.0
      %74 = vmatpush1.msra.mxu0 0.0
      %75 = vmatprep.subr.mxu0 0.0
      %76 = vmatpush1.msra.mxu0 0.0
      %77 = vmatprep.subr.mxu0 0.0
      %78 = vmatpush1.msra.mxu0 0.0
      %79 = vmatprep.subr.mxu0 0.0
      %80 = vmatpush1.msra.mxu0 0.0
      %81 = vmatprep.subr.mxu0 0.0
      %82 = vmatpush1.msra.mxu0 %v49
      %83 = vmatprep.subr.mxu0 0.0
      %84 = vmatpush1.msra.mxu0 %v48
      %85 = vmatprep.subr.mxu0 0.0
      %86 = vmatpush1.msra.mxu0 %v47
      %87 = vmatprep.subr.mxu0 0.0
      %88 = vmatpush1.msra.mxu0 %v46
      %89 = vmatprep.subr.mxu0 0.0
      %90 = vmatpush2.msra.mxu0 0.0
      %91 = vmatprep.subr.mxu0 0.0
      %92 = vmatpush2.msra.mxu0 0.0
      %93 = vmatprep.subr.mxu0 0.0
      %94 = vmatpush2.msra.mxu0 0.0
      %95 = vmatprep.subr.mxu0 0.0
      %96 = vmatpush2.msra.mxu0 0.0
      %97 = vmatprep.subr.mxu0 0.0
      %98 = vmatpush2.msra.mxu0 0.0
      %99 = vmatprep.subr.mxu0 0.0
      %100 = vmatpush2.msra.mxu0 0.0
      %101 = vmatprep.subr.mxu0 0.0
      %102 = vmatpush2.msra.mxu0 0.0
      %103 = vmatprep.subr.mxu0 0.0
      %104 = vmatpush2.msra.mxu0 0.0
      %105 = vmatprep.subr.mxu0 0.0
      %106 = vmatpush2.msra.mxu0 0.0
      %107 = vmatprep.subr.mxu0 0.0
      %108 = vmatpush2.msra.mxu0 0.0
      %109 = vmatprep.subr.mxu0 0.0
      %110 = vmatpush2.msra.mxu0 0.0
      %111 = vmatprep.subr.mxu0 0.0
      %112 = vmatpush2.msra.mxu0 0.0
      %113 = vmatprep.subr.mxu0 0.0
      %114 = vmatpush2.msra.mxu0 0.0
      %115 = vmatprep.subr.mxu0 0.0
      %116 = vmatpush2.msra.mxu0 0.0
      %117 = vmatprep.subr.mxu0 0.0
      %118 = vmatpush2.msra.mxu0 0.0
      %119 = vmatprep.subr.mxu0 0.0
      %120 = vmatpush2.msra.mxu0 0.0
      %121 = vmatprep.mubr.f32.mxu0 0.0
      %122 = vmatmul.mubr.f32.gmra.mxu0 %v52
      %v123 = vpop.f32.mrf.mxu0
      %v124 = vadd.f32 0.0, %v123
      %v125 = vpop.f32.mrf.mxu0
      %126 = vmatprep.mubr.f32.mxu0 0.0
      %127 = vmatmul.mubr.f32.gmra.mxu0 %v55
      %v128 = vpop.f32.mrf.mxu0
      %v129 = vadd.f32 0.0, %v128
      %v130 = vpop.f32.mrf.mxu0
      %131 = vdwg.mxu0
      %132 = vst [vmem:[#allocation2] sm:$0xff] %v124
      %133 = vst [vmem:[#allocation2 + $0x8] sm:$0xff] %v129
      %134 = vst [vmem:[#allocation3] sm:$0xff] 0.0
      %135 = vst [vmem:[#allocation3 + $0x8] sm:$0xff] 0.0
    $region21: #{tpu_custom_call.1} parent=1 // pred_fallthru
      _
    %v136 = vld [vmem:[#allocation4] sm:$0xff]
    %v137 = vld [vmem:[#allocation4 + $0x8] sm:$0xff]
    %v138 = vld [vmem:[#allocation7 + $0x8] sm:$0xff]
    %v139 = vld [vmem:[#allocation7 + $0x10] sm:$0xff]
    %v140 = vld [vmem:[#allocation7 + $0x20] sm:$0xff]
    %v141 = vld [vmem:[#allocation7 + $0x28] sm:$0xff]
    %v142 = vld [vmem:[#allocation7 + $0x38] sm:$0xff]
    %v143 = vld [vmem:[#allocation7 + $0x40] sm:$0xff]
    %v144 = vld [vmem:[#allocation7 + $0x50] sm:$0xff]
    %v145 = vld [vmem:[#allocation7 + $0x58] sm:$0xff]
    %vm146 = vcmask 261120
    %v148 = vsel %vm146, %v136, 0
    %v151 = vsel %vm146, %v137, 0
    %153 = vmatprep.subr.mxu0 0.0
    %154 = vmatpush1.msra.mxu0 0.0
    %155 = vmatprep.subr.mxu0 0.0
    %156 = vmatpush1.msra.mxu0 0.0
    %157 = vmatprep.subr.mxu0 0.0
    %158 = vmatpush1.msra.mxu0 0.0
    %159 = vmatprep.subr.mxu0 0.0
    %160 = vmatpush1.msra.mxu0 0.0
    %161 = vmatprep.subr.mxu0 0.0
    %162 = vmatpush1.msra.mxu0 0.0
    %163 = vmatprep.subr.mxu0 0.0
    %164 = vmatpush1.msra.mxu0 0.0
    %165 = vmatprep.subr.mxu0 0.0
    %166 = vmatpush1.msra.mxu0 0.0
    %167 = vmatprep.subr.mxu0 0.0
    %168 = vmatpush1.msra.mxu0 0.0
    %169 = vmatprep.subr.mxu0 0.0
    %170 = vmatpush1.msra.mxu0 0.0
    %171 = vmatprep.subr.mxu0 0.0
    %172 = vmatpush1.msra.mxu0 0.0
    %173 = vmatprep.subr.mxu0 0.0
    %174 = vmatpush1.msra.mxu0 0.0
    %175 = vmatprep.subr.mxu0 0.0
    %176 = vmatpush1.msra.mxu0 0.0
    %177 = vmatprep.subr.mxu0 %v145
    %178 = vmatpush1.msra.mxu0 %v144
    %179 = vmatprep.subr.mxu0 %v143
    %180 = vmatpush1.msra.mxu0 %v142
    %181 = vmatprep.subr.mxu0 %v141
    %182 = vmatpush1.msra.mxu0 %v140
    %183 = vmatprep.subr.mxu0 %v139
    %184 = vmatpush1.msra.mxu0 %v138
    %185 = vmatprep.subr.mxu0 0.0
    %186 = vmatpush2.msra.mxu0 0.0
    %187 = vmatprep.subr.mxu0 0.0
    %188 = vmatpush2.msra.mxu0 0.0
    %189 = vmatprep.subr.mxu0 0.0
    %190 = vmatpush2.msra.mxu0 0.0
    %191 = vmatprep.subr.mxu0 0.0
    %192 = vmatpush2.msra.mxu0 0.0
    %193 = vmatprep.subr.mxu0 0.0
    %194 = vmatpush2.msra.mxu0 0.0
    %195 = vmatprep.subr.mxu0 0.0
    %196 = vmatpush2.msra.mxu0 0.0
    %197 = vmatprep.subr.mxu0 0.0
    %198 = vmatpush2.msra.mxu0 0.0
    %199 = vmatprep.subr.mxu0 0.0
    %200 = vmatpush2.msra.mxu0 0.0
    %201 = vmatprep.subr.mxu0 0.0
    %202 = vmatpush2.msra.mxu0 0.0
    %203 = vmatprep.subr.mxu0 0.0
    %204 = vmatpush2.msra.mxu0 0.0
    %205 = vmatprep.subr.mxu0 0.0
    %206 = vmatpush2.msra.mxu0 0.0
    %207 = vmatprep.subr.mxu0 0.0
    %208 = vmatpush2.msra.mxu0 0.0
    %209 = vmatprep.subr.mxu0 0.0
    %210 = vmatpush2.msra.mxu0 0.0
    %211 = vmatprep.subr.mxu0 0.0
    %212 = vmatpush2.msra.mxu0 0.0
    %213 = vmatprep.subr.mxu0 0.0
    %214 = vmatpush2.msra.mxu0 0.0
    %215 = vmatprep.subr.mxu0 0.0
    %216 = vmatpush2.msra.mxu0 0.0
    %217 = vmatprep.mubr.f32.mxu0 0.0
    %218 = vmatmul.mubr.f32.gmra.mxu0 %v148
    %v219 = vpop.f32.mrf.mxu0
    %v220 = vadd.f32 0.0, %v219
    %v221 = vpop.f32.mrf.mxu0
    %v222 = vadd.f32 0.0, %v221
    %223 = vmatprep.mubr.f32.mxu0 0.0
    %224 = vmatmul.mubr.f32.gmra.mxu0 %v151
    %v225 = vpop.f32.mrf.mxu0
    %v226 = vadd.f32 0.0, %v225
    %v227 = vpop.f32.mrf.mxu0
    %v228 = vadd.f32 0.0, %v227
    %229 = vdwg.mxu0
    %v230 = vld [vmem:[#allocation2] sm:$0xff]
    %v231 = vld [vmem:[#allocation2 + $0x8] sm:$0xff]
    %232 = vmatprep.subr.mxu0 0.0
    %233 = vmatpush1.xpose.msra.mxu0 0.0
    %234 = vmatprep.subr.mxu0 0.0
    %235 = vmatpush1.xpose.msra.mxu0 0.0
    %236 = vmatprep.subr.mxu0 0.0
    %237 = vmatpush1.xpose.msra.mxu0 0.0
    %238 = vmatprep.subr.mxu0 0.0
    %239 = vmatpush1.xpose.msra.mxu0 0.0
    %240 = vmatprep.subr.mxu0 0.0
    %241 = vmatpush1.xpose.msra.mxu0 0.0
    %242 = vmatprep.subr.mxu0 0.0
    %243 = vmatpush1.xpose.msra.mxu0 0.0
    %244 = vmatprep.subr.mxu0 0.0
    %245 = vmatpush1.xpose.msra.mxu0 0.0
    %246 = vmatprep.subr.mxu0 0.0
    %247 = vmatpush1.xpose.msra.mxu0 0.0
    %248 = vmatprep.subr.mxu0 0.0
    %249 = vmatpush1.xpose.msra.mxu0 0.0
    %250 = vmatprep.subr.mxu0 0.0
    %251 = vmatpush1.xpose.msra.mxu0 0.0
    %252 = vmatprep.subr.mxu0 0.0
    %253 = vmatpush1.xpose.msra.mxu0 0.0
    %254 = vmatprep.subr.mxu0 0.0
    %255 = vmatpush1.xpose.msra.mxu0 0.0
    %256 = vmatprep.subr.mxu0 0.0
    %257 = vmatpush1.xpose.msra.mxu0 0.0
    %258 = vmatprep.subr.mxu0 0.0
    %259 = vmatpush1.xpose.msra.mxu0 0.0
    %260 = vmatprep.subr.mxu0 0.0
    %261 = vmatpush1.xpose.msra.mxu0 0.0
    %262 = vmatprep.subr.mxu0 0.0
    %263 = vmatpush1.xpose.msra.mxu0 %v220
    %264 = vmatprep.subr.mxu0 0.0
    %265 = vmatpush2.xpose.msra.mxu0 0.0
    %266 = vmatprep.subr.mxu0 0.0
    %267 = vmatpush2.xpose.msra.mxu0 0.0
    %268 = vmatprep.subr.mxu0 0.0
    %269 = vmatpush2.xpose.msra.mxu0 0.0
    %270 = vmatprep.subr.mxu0 0.0
    %271 = vmatpush2.xpose.msra.mxu0 0.0
    %272 = vmatprep.subr.mxu0 0.0
    %273 = vmatpush2.xpose.msra.mxu0 0.0
    %274 = vmatprep.subr.mxu0 0.0
    %275 = vmatpush2.xpose.msra.mxu0 0.0
    %276 = vmatprep.subr.mxu0 0.0
    %277 = vmatpush2.xpose.msra.mxu0 0.0
    %278 = vmatprep.subr.mxu0 0.0
    %279 = vmatpush2.xpose.msra.mxu0 0.0
    %280 = vmatprep.subr.mxu0 0.0
    %281 = vmatpush2.xpose.msra.mxu0 0.0
    %282 = vmatprep.subr.mxu0 0.0
    %283 = vmatpush2.xpose.msra.mxu0 0.0
    %284 = vmatprep.subr.mxu0 0.0
    %285 = vmatpush2.xpose.msra.mxu0 0.0
    %286 = vmatprep.subr.mxu0 0.0
    %287 = vmatpush2.xpose.msra.mxu0 0.0
    %288 = vmatprep.subr.mxu0 0.0
    %289 = vmatpush2.xpose.msra.mxu0 0.0
    %290 = vmatprep.subr.mxu0 0.0
    %291 = vmatpush2.xpose.msra.mxu0 0.0
    %292 = vmatprep.subr.mxu0 0.0
    %293 = vmatpush2.xpose.msra.mxu0 0.0
    %294 = vmatprep.subr.mxu0 0.0
    %295 = vmatpush2.xpose.msra.mxu0 0.0
    %296 = vmatprep.mubr.f32.mxu0 0.0
    %297 = vmatmul.mubr.f32.gmra.mxu0 %v230
    %v298 = vpop.f32.mrf.mxu0
    %v299 = vadd.f32 0.0, %v298
    %v300 = vpop.f32.mrf.mxu0
    %301 = vdwg.mxu0
    %302 = vmatprep.subr.mxu0 0.0
    %303 = vmatpush1.xpose.msra.mxu0 0.0
    %304 = vmatprep.subr.mxu0 0.0
    %305 = vmatpush1.xpose.msra.mxu0 0.0
    %306 = vmatprep.subr.mxu0 0.0
    %307 = vmatpush1.xpose.msra.mxu0 0.0
    %308 = vmatprep.subr.mxu0 0.0
    %309 = vmatpush1.xpose.msra.mxu0 0.0
    %310 = vmatprep.subr.mxu0 0.0
    %311 = vmatpush1.xpose.msra.mxu0 0.0
    %312 = vmatprep.subr.mxu0 0.0
    %313 = vmatpush1.xpose.msra.mxu0 0.0
    %314 = vmatprep.subr.mxu0 0.0
    %315 = vmatpush1.xpose.msra.mxu0 0.0
    %316 = vmatprep.subr.mxu0 0.0
    %317 = vmatpush1.xpose.msra.mxu0 0.0
    %318 = vmatprep.subr.mxu0 0.0
    %319 = vmatpush1.xpose.msra.mxu0 0.0
    %320 = vmatprep.subr.mxu0 0.0
    %321 = vmatpush1.xpose.msra.mxu0 0.0
    %322 = vmatprep.subr.mxu0 0.0
    %323 = vmatpush1.xpose.msra.mxu0 0.0
    %324 = vmatprep.subr.mxu0 0.0
    %325 = vmatpush1.xpose.msra.mxu0 0.0
    %326 = vmatprep.subr.mxu0 0.0
    %327 = vmatpush1.xpose.msra.mxu0 0.0
    %328 = vmatprep.subr.mxu0 0.0
    %329 = vmatpush1.xpose.msra.mxu0 0.0
    %330 = vmatprep.subr.mxu0 0.0
    %331 = vmatpush1.xpose.msra.mxu0 0.0
    %332 = vmatprep.subr.mxu0 0.0
    %333 = vmatpush1.xpose.msra.mxu0 %v226
    %334 = vmatprep.subr.mxu0 0.0
    %335 = vmatpush2.xpose.msra.mxu0 0.0
    %336 = vmatprep.subr.mxu0 0.0
    %337 = vmatpush2.xpose.msra.mxu0 0.0
    %338 = vmatprep.subr.mxu0 0.0
    %339 = vmatpush2.xpose.msra.mxu0 0.0
    %340 = vmatprep.subr.mxu0 0.0
    %341 = vmatpush2.xpose.msra.mxu0 0.0
    %342 = vmatprep.subr.mxu0 0.0
    %343 = vmatpush2.xpose.msra.mxu0 0.0
    %344 = vmatprep.subr.mxu0 0.0
    %345 = vmatpush2.xpose.msra.mxu0 0.0
    %346 = vmatprep.subr.mxu0 0.0
    %347 = vmatpush2.xpose.msra.mxu0 0.0
    %348 = vmatprep.subr.mxu0 0.0
    %349 = vmatpush2.xpose.msra.mxu0 0.0
    %350 = vmatprep.subr.mxu0 0.0
    %351 = vmatpush2.xpose.msra.mxu0 0.0
    %352 = vmatprep.subr.mxu0 0.0
    %353 = vmatpush2.xpose.msra.mxu0 0.0
    %354 = vmatprep.subr.mxu0 0.0
    %355 = vmatpush2.xpose.msra.mxu0 0.0
    %356 = vmatprep.subr.mxu0 0.0
    %357 = vmatpush2.xpose.msra.mxu0 0.0
    %358 = vmatprep.subr.mxu0 0.0
    %359 = vmatpush2.xpose.msra.mxu0 0.0
    %360 = vmatprep.subr.mxu0 0.0
    %361 = vmatpush2.xpose.msra.mxu0 0.0
    %362 = vmatprep.subr.mxu0 0.0
    %363 = vmatpush2.xpose.msra.mxu0 0.0
    %364 = vmatprep.subr.mxu0 0.0
    %365 = vmatpush2.xpose.msra.mxu0 0.0
    %366 = vmatprep.mubr.f32.mxu0 0.0
    %367 = vmatmul.mubr.f32.gmra.mxu0 %v231
    %v368 = vpop.f32.mrf.mxu0
    %v369 = vadd.f32 0.0, %v368
    %v370 = vpop.f32.mrf.mxu0
    %371 = vdwg.mxu0
    %vm372 = vcmask 64512
    %v373 = vsel %vm372, %v299, -inf
    %v374 = vrot.slane %v373, 4
    %v375 = vmax.f32 %v373, %v374
    %v376 = vrot.slane %v375, 2
    %v377 = vmax.f32 %v375, %v376
    %v378 = vrot.slane %v377, 1
    %v379 = vmax.f32 %v377, %v378
    %v380 = vsel %vm372, %v369, -inf
    %v381 = vrot.slane %v380, 4
    %v382 = vmax.f32 %v380, %v381
    %v383 = vrot.slane %v382, 2
    %v384 = vmax.f32 %v382, %v383
    %v385 = vrot.slane %v384, 1
    %v386 = vmax.f32 %v384, %v385
    %v387 = vsub.f32 %v299, %v379
    %v388 = vsub.f32 %v369, %v386
    %v389 = vmul.f32 %v387, 1.442695
    %v390 = vpow.pop %v389
    %v391 = vmul.f32 %v388, 1.442695
    %v392 = vpow.pop %v391
    %v393 = vsel %vm372, %v390, 0.0
    %v394 = vrot.slane %v393, 4
    %v395 = vadd.f32 %v393, %v394
    %v396 = vrot.slane %v395, 2
    %v397 = vadd.f32 %v395, %v396
    %v398 = vrot.slane %v397, 1
    %v399 = vadd.f32 %v397, %v398
    %v400 = vsel %vm372, %v392, 0.0
    %v401 = vrot.slane %v400, 4
    %v402 = vadd.f32 %v400, %v401
    %v403 = vrot.slane %v402, 2
    %v404 = vadd.f32 %v402, %v403
    %v405 = vrot.slane %v404, 1
    %v406 = vadd.f32 %v404, %v405
    %v407 = vrcp.pop %v399
    %v408 = vmul.f32 %v390, %v407
    %v409 = vrcp.pop %v406
    %v410 = vmul.f32 %v392, %v409
    %v411 = vld [vmem:[#allocation3] sm:$0xff]
    %v412 = vld [vmem:[#allocation3 + $0x8] sm:$0xff]
    %v414 = vsel %vm372, %v408, 0
    %416 = vmatprep.subr.mxu0 0.0
    %417 = vmatpush1.msra.mxu0 0.0
    %418 = vmatprep.subr.mxu0 0.0
    %419 = vmatpush1.msra.mxu0 0.0
    %420 = vmatprep.subr.mxu0 0.0
    %421 = vmatpush1.msra.mxu0 0.0
    %422 = vmatprep.subr.mxu0 0.0
    %423 = vmatpush1.msra.mxu0 0.0
    %424 = vmatprep.subr.mxu0 0.0
    %425 = vmatpush1.msra.mxu0 0.0
    %426 = vmatprep.subr.mxu0 0.0
    %427 = vmatpush1.msra.mxu0 0.0
    %428 = vmatprep.subr.mxu0 0.0
    %429 = vmatpush1.msra.mxu0 0.0
    %430 = vmatprep.subr.mxu0 0.0
    %431 = vmatpush1.msra.mxu0 0.0
    %432 = vmatprep.subr.mxu0 0.0
    %433 = vmatpush1.msra.mxu0 0.0
    %434 = vmatprep.subr.mxu0 0.0
    %435 = vmatpush1.msra.mxu0 0.0
    %436 = vmatprep.subr.mxu0 0.0
    %437 = vmatpush1.msra.mxu0 0.0
    %438 = vmatprep.subr.mxu0 0.0
    %439 = vmatpush1.msra.mxu0 0.0
    %440 = vmatprep.subr.mxu0 0.0
    %441 = vmatpush1.msra.mxu0 0.0
    %442 = vmatprep.subr.mxu0 0.0
    %443 = vmatpush1.msra.mxu0 0.0
    %444 = vmatprep.subr.mxu0 0.0
    %445 = vmatpush1.msra.mxu0 0.0
    %446 = vmatprep.subr.mxu0 0.0
    %447 = vmatpush1.msra.mxu0 %v222
    %448 = vmatprep.subr.mxu0 0.0
    %449 = vmatpush2.msra.mxu0 0.0
    %450 = vmatprep.subr.mxu0 0.0
    %451 = vmatpush2.msra.mxu0 0.0
    %452 = vmatprep.subr.mxu0 0.0
    %453 = vmatpush2.msra.mxu0 0.0
    %454 = vmatprep.subr.mxu0 0.0
    %455 = vmatpush2.msra.mxu0 0.0
    %456 = vmatprep.subr.mxu0 0.0
    %457 = vmatpush2.msra.mxu0 0.0
    %458 = vmatprep.subr.mxu0 0.0
    %459 = vmatpush2.msra.mxu0 0.0
    %460 = vmatprep.subr.mxu0 0.0
    %461 = vmatpush2.msra.mxu0 0.0
    %462 = vmatprep.subr.mxu0 0.0
    %463 = vmatpush2.msra.mxu0 0.0
    %464 = vmatprep.subr.mxu0 0.0
    %465 = vmatpush2.msra.mxu0 0.0
    %466 = vmatprep.subr.mxu0 0.0
    %467 = vmatpush2.msra.mxu0 0.0
    %468 = vmatprep.subr.mxu0 0.0
    %469 = vmatpush2.msra.mxu0 0.0
    %470 = vmatprep.subr.mxu0 0.0
    %471 = vmatpush2.msra.mxu0 0.0
    %472 = vmatprep.subr.mxu0 0.0
    %473 = vmatpush2.msra.mxu0 0.0
    %474 = vmatprep.subr.mxu0 0.0
    %475 = vmatpush2.msra.mxu0 0.0
    %476 = vmatprep.subr.mxu0 0.0
    %477 = vmatpush2.msra.mxu0 0.0
    %478 = vmatprep.subr.mxu0 0.0
    %479 = vmatpush2.msra.mxu0 0.0
    %480 = vmatprep.mubr.f32.mxu0 0.0
    %481 = vmatmul.mubr.f32.gmra.mxu0 %v414
    %v482 = vpop.f32.mrf.mxu0
    %v483 = vadd.f32 0.0, %v482
    %v484 = vpop.f32.mrf.mxu0
    %485 = vdwg.mxu0
    %v487 = vsel %vm372, %v410, 0
    %489 = vmatprep.subr.mxu0 0.0
    %490 = vmatpush1.msra.mxu0 0.0
    %491 = vmatprep.subr.mxu0 0.0
    %492 = vmatpush1.msra.mxu0 0.0
    %493 = vmatprep.subr.mxu0 0.0
    %494 = vmatpush1.msra.mxu0 0.0
    %495 = vmatprep.subr.mxu0 0.0
    %496 = vmatpush1.msra.mxu0 0.0
    %497 = vmatprep.subr.mxu0 0.0
    %498 = vmatpush1.msra.mxu0 0.0
    %499 = vmatprep.subr.mxu0 0.0
    %500 = vmatpush1.msra.mxu0 0.0
    %501 = vmatprep.subr.mxu0 0.0
    %502 = vmatpush1.msra.mxu0 0.0
    %503 = vmatprep.subr.mxu0 0.0
    %504 = vmatpush1.msra.mxu0 0.0
    %505 = vmatprep.subr.mxu0 0.0
    %506 = vmatpush1.msra.mxu0 0.0
    %507 = vmatprep.subr.mxu0 0.0
    %508 = vmatpush1.msra.mxu0 0.0
    %509 = vmatprep.subr.mxu0 0.0
    %510 = vmatpush1.msra.mxu0 0.0
    %511 = vmatprep.subr.mxu0 0.0
    %512 = vmatpush1.msra.mxu0 0.0
    %513 = vmatprep.subr.mxu0 0.0
    %514 = vmatpush1.msra.mxu0 0.0
    %515 = vmatprep.subr.mxu0 0.0
    %516 = vmatpush1.msra.mxu0 0.0
    %517 = vmatprep.subr.mxu0 0.0
    %518 = vmatpush1.msra.mxu0 0.0
    %519 = vmatprep.subr.mxu0 0.0
    %520 = vmatpush1.msra.mxu0 %v228
    %521 = vmatprep.subr.mxu0 0.0
    %522 = vmatpush2.msra.mxu0 0.0
    %523 = vmatprep.subr.mxu0 0.0
    %524 = vmatpush2.msra.mxu0 0.0
    %525 = vmatprep.subr.mxu0 0.0
    %526 = vmatpush2.msra.mxu0 0.0
    %527 = vmatprep.subr.mxu0 0.0
    %528 = vmatpush2.msra.mxu0 0.0
    %529 = vmatprep.subr.mxu0 0.0
    %530 = vmatpush2.msra.mxu0 0.0
    %531 = vmatprep.subr.mxu0 0.0
    %532 = vmatpush2.msra.mxu0 0.0
    %533 = vmatprep.subr.mxu0 0.0
    %534 = vmatpush2.msra.mxu0 0.0
    %535 = vmatprep.subr.mxu0 0.0
    %536 = vmatpush2.msra.mxu0 0.0
    %537 = vmatprep.subr.mxu0 0.0
    %538 = vmatpush2.msra.mxu0 0.0
    %539 = vmatprep.subr.mxu0 0.0
    %540 = vmatpush2.msra.mxu0 0.0
    %541 = vmatprep.subr.mxu0 0.0
    %542 = vmatpush2.msra.mxu0 0.0
    %543 = vmatprep.subr.mxu0 0.0
    %544 = vmatpush2.msra.mxu0 0.0
    %545 = vmatprep.subr.mxu0 0.0
    %546 = vmatpush2.msra.mxu0 0.0
    %547 = vmatprep.subr.mxu0 0.0
    %548 = vmatpush2.msra.mxu0 0.0
    %549 = vmatprep.subr.mxu0 0.0
    %550 = vmatpush2.msra.mxu0 0.0
    %551 = vmatprep.subr.mxu0 0.0
    %552 = vmatpush2.msra.mxu0 0.0
    %553 = vmatprep.mubr.f32.mxu0 0.0
    %554 = vmatmul.mubr.f32.gmra.mxu0 %v487
    %v555 = vpop.f32.mrf.mxu0
    %v556 = vadd.f32 0.0, %v555
    %v557 = vpop.f32.mrf.mxu0
    %558 = vdwg.mxu0
    %v559 = vadd.f32 %v411, %v483
    %v560 = vadd.f32 %v412, %v556
    %561 = vst [vmem:[#allocation3] sm:$0xff] %v559
    %562 = vst [vmem:[#allocation3 + $0x8] sm:$0xff] %v560
    // Predicated region
    $region22: #{tpu_custom_call.1} parent=1 // pred_check
      %p563 = pneg %p40
    $region23: #{tpu_custom_call.1} parent=1 // pred_check_branch
      %565 = sbr.rel (%p563) target = $region25
    $region24: #{tpu_custom_call.1} parent=1 // pred_region
      %v566 = vld [vmem:[#allocation3] sm:$0xff]
      %v567 = vld [vmem:[#allocation3 + $0x8] sm:$0xff]
      %568 = vst [vmem:[#allocation9] sm:$0xff] %v566
      %569 = vst [vmem:[#allocation9 + $0x8] sm:$0xff] %v567
    $region25: #{tpu_custom_call.1} parent=1 // pred_fallthru
      _
    // Predicated region
    $region26: #{tpu_custom_call.1} parent=1 // pred_check
      _
    $region27: #{tpu_custom_call.1} parent=1 // pred_check_branch
      %571 = sbr.rel (0) target = $region29
    $region28: #{tpu_custom_call.1} parent=1 // pred_region
      %s573 = ssub.s32 256, 256
      %574 = vsyncadd [#allocation6], %s573
      %s575 = sshll.u32 [#allocation9], 4
      %s576 = int_to_ptr.vmem [resolvable:$true] %s575
      %581 = dma.vmem_to_hbm [thread:$0]  %s576, 256, %s2, [#allocation6], 128, 128, 8
    $region29: #{tpu_custom_call.1} parent=1 // pred_fallthru
      _
    // Predicated region
    $region30: #{tpu_custom_call.1} parent=1 // pred_check
      _
    $region31: #{tpu_custom_call.1} parent=1 // pred_check_branch
      %583 = sbr.rel (0) target = $region33
    $region32: #{tpu_custom_call.1} parent=1 // pred_region
      %584 = dma.done [#allocation6], 256
    $region33: #{tpu_custom_call.1} parent=1 // pred_fallthru
      _
    %585 = vsyncpa [#allocation5], 1
    %586 = vsyncpa [#allocation8], 1
    %587 = vsyncpa [#allocation6], 1

</llo_original>
